<compile_context>
chip_gen: v7x
topology: tpu7x:2x2x1
jax: 0.10.0
libtpu: 0.0.40
codegen_flags: <defaults>
</compile_context>

<pallas_src>
import jax
import jax.numpy as jnp
from jax.experimental import pallas as pl
from jax.experimental.pallas import tpu as pltpu


def attention_agg_kernel(x_ref, mask_ref, u_ref, o_ref):
    bt, s, h = x_ref.shape
    x = x_ref[...]                                      # (Bt, S, H) stream dtype
    mask = mask_ref[...]                                # (Bt, 1, S) f32, 1.0 = masked

    # scores = x @ u  (folded fc + weight_vec), lane-dense (Bt, 1, S).
    u = pl.broadcast_to(u_ref[...], (bt, 1, h)).astype(x.dtype)
    scores = jnp.einsum("bqh,bsh->bqs", u, x,
                        preferred_element_type=jnp.float32)           # (Bt, 1, S)
    scores = jnp.where(mask > 0.0, -jnp.inf, scores)

    # Softmax over the sequence (f32, lane reductions).
    # NOTE: a fully-masked row yields NaN, matching the PyTorch reference.
    m = jnp.max(scores, axis=-1, keepdims=True)                        # (Bt, 1, 1)
    p = jnp.exp(scores - m)                                            # (Bt, 1, S)
    denom = jnp.sum(p, axis=-1, keepdims=True)                         # (Bt, 1, 1)

    # Weighted sum over the sequence on the MXU; normalize once at the end
    # (H multiplies instead of S divisions).
    acc = jnp.einsum("bqs,bsh->bqh", p.astype(x.dtype), x,
                     preferred_element_type=jnp.float32)               # (Bt, 1, H)
    o_ref[...] = (acc * pl.reciprocal(denom, approx=False)).astype(o_ref.dtype)


def _pick_block_b(B, S, H, itemsize, vmem_budget_bytes=8 * 1024 * 1024):
    """Largest batch tile whose double-buffered x blocks fit the budget, divides B,
    and leaves >= 2 grid steps (v7x megacore) when possible."""
    bt = max(1, vmem_budget_bytes // (2 * S * H * itemsize))
    bt = min(bt, B)
    if B >= 2:
        bt = min(bt, B // 2)
    bt = max(bt, 1)
    while B % bt != 0:
        bt -= 1
    return bt


def attention_aggregator(x, x_mask, w_fc, b_fc, weight_vec, *,
                         stream_dtype=None, block_b=None):
    """x: (B,S,H), x_mask: (B,S) bool (True = masked), w_fc: (H,H) (out,in),
    b_fc: (H,), weight_vec: (H,1).  Returns (B,1,H) float32."""
    B, S, H = x.shape

    # Fold fc + weight_vec:  u[h] = sum_o weight_vec[o] * w_fc[o, h].
    # The bias contribution b_fc @ weight_vec is constant over the sequence
    # and cancels under softmax, so it is dropped (pure rounding-level change).
    u = jnp.matmul(jnp.asarray(weight_vec, jnp.float32).T,
                   jnp.asarray(w_fc, jnp.float32)).reshape(1, 1, H)    # (1, 1, H)
    del b_fc

    x_in = x.astype(stream_dtype) if stream_dtype is not None else x.astype(jnp.float32)
    maskf = x_mask.astype(jnp.float32).reshape(B, 1, S)                # lane-dense

    if block_b is None:
        block_b = _pick_block_b(B, S, H, jnp.dtype(x_in.dtype).itemsize)
    grid = (B // block_b,)

    return pl.pallas_call(
        attention_agg_kernel,
        out_shape=jax.ShapeDtypeStruct((B, 1, H), jnp.float32),
        grid=grid,
        in_specs=[
            pl.BlockSpec((block_b, S, H), lambda b: (b, 0, 0)),   # x batch tile
            pl.BlockSpec((block_b, 1, S), lambda b: (b, 0, 0)),   # mask (lane-dense)
            pl.BlockSpec((1, 1, H), lambda b: (0, 0, 0)),         # folded weight u
        ],
        out_specs=pl.BlockSpec((block_b, 1, H), lambda b: (b, 0, 0)),
        compiler_params=pltpu.CompilerParams(dimension_semantics=("parallel",)),
    )(x_in, maskf, u)


def _reference(x, x_mask, w_fc, b_fc, weight_vec):
    e = jnp.einsum("bsh,oh->bso", x, w_fc) + b_fc                      # (B,S,H)
    s = jnp.squeeze(jnp.matmul(e, weight_vec), axis=-1)                # (B,S)
    s = jnp.where(x_mask, -jnp.inf, s)
    w = jax.nn.softmax(s, axis=1)                                      # (B,S)
    return jnp.einsum("bs,bsh->bh", w, x)[:, None, :]                  # (B,1,H)


if __name__ == "__main__":
    B, S, H = 2, 8, 32
    key = jax.random.PRNGKey(0)
    kx, kw, kb, kv = jax.random.split(key, 4)

    x = jax.random.normal(kx, (B, S, H), jnp.float32)
    # mask out the tail of each sequence (True = masked), at least one token kept
    lengths = jnp.array([5, 8], jnp.int32)
    x_mask = jnp.arange(S)[None, :] >= lengths[:, None]                # (B, S) bool

    # Deterministic parameter init (shapes from __init__): fc: Linear(H, H); weight_vec: (H, 1)
    bound = 1.0 / jnp.sqrt(H)
    w_fc = jax.random.uniform(kw, (H, H), jnp.float32, -bound, bound)  # (out, in)
    b_fc = jax.random.uniform(kb, (H,), jnp.float32, -bound, bound)
    xavier_std = jnp.sqrt(2.0 / (H + 1))
    weight_vec = xavier_std * jax.random.normal(kv, (H, 1), jnp.float32)

    out = attention_aggregator(x, x_mask, w_fc, b_fc, weight_vec)
    out = jax.block_until_ready(out)

    ref = _reference(x, x_mask, w_fc, b_fc, weight_vec)
    assert out.shape == (B, 1, H)
    assert jnp.allclose(out, ref, atol=1e-4, rtol=1e-4), float(jnp.max(jnp.abs(out - ref)))

    # bf16-streamed variant (halves the HBM x stream on v5e/v6e; f32 accumulation).
    out_bf16 = jax.block_until_ready(
        attention_aggregator(x, x_mask, w_fc, b_fc, weight_vec,
                             stream_dtype=jnp.bfloat16))
    assert jnp.allclose(out_bf16, ref, atol=5e-2, rtol=5e-2)

    print("KERNEL_OK")
</pallas_src>

<mosaic_0001>
module attributes {stable_mosaic.version = 11 : i64} {
  func.func @attention_agg_kernel(%arg0: i32, %arg1: memref<1x8x32xf32, #tpu.memory_space<vmem>>, %arg2: memref<1x1x8xf32, #tpu.memory_space<vmem>>, %arg3: memref<1x1x32xf32, #tpu.memory_space<vmem>>, %arg4: memref<1x1x32xf32, #tpu.memory_space<vmem>>) attributes {dimension_semantics = [#tpu.dimension_semantics<parallel>], iteration_bounds = array<i64: 2>, scalar_prefetch = 0 : i64, scratch_operands = 0 : i64, tpu.core_type = #tpu.core_type<tc>, window_params = [{transform_indices = @transform_0, window_bounds = array<i64: 1, 8, 32>}, {transform_indices = @transform_1, window_bounds = array<i64: 1, 1, 8>}, {pipeline_mode = #tpu.pipeline_mode<synchronous>, transform_indices = @transform_2, window_bounds = array<i64: 1, 1, 32>}, {transform_indices = @transform_3, window_bounds = array<i64: 1, 1, 32>}]} {
    %c0 = arith.constant 0 : index
    %c0_0 = arith.constant 0 : index
    %c0_1 = arith.constant 0 : index
    %0 = vector.load %arg1[%c0, %c0_0, %c0_1] : memref<1x8x32xf32, #tpu.memory_space<vmem>>, vector<1x8x32xf32>
    %c0_2 = arith.constant 0 : index
    %c0_3 = arith.constant 0 : index
    %c0_4 = arith.constant 0 : index
    %1 = vector.load %arg2[%c0_2, %c0_3, %c0_4] : memref<1x1x8xf32, #tpu.memory_space<vmem>>, vector<1x1x8xf32>
    %c0_5 = arith.constant 0 : index
    %c0_6 = arith.constant 0 : index
    %c0_7 = arith.constant 0 : index
    %2 = vector.load %arg3[%c0_5, %c0_6, %c0_7] : memref<1x1x32xf32, #tpu.memory_space<vmem>>, vector<1x1x32xf32>
    "tpu.trace_start"() <{level = 10 : i32, message = "bqh,bsh->bqs"}> : () -> ()
    %cst = arith.constant dense<0.000000e+00> : vector<1x1x8xf32>
    %3 = tpu.matmul %2, %0, %cst {dimension_numbers = #tpu.dot_dimension_numbers<[2], [2], [1], [1], [0, 0, 0, 1, 1, 1], [0], [0]>} : vector<1x1x32xf32>, vector<1x8x32xf32>, vector<1x1x8xf32> -> vector<1x1x8xf32>
    %cst_8 = arith.constant 0.000000e+00 : f32
    "tpu.trace_stop"() : () -> ()
    %4 = vector.broadcast %cst_8 : f32 to vector<1x1x8xf32>
    %5 = arith.cmpf ogt, %1, %4 : vector<1x1x8xf32>
    %cst_9 = arith.constant 0xFF800000 : f32
    %6 = vector.broadcast %cst_9 : f32 to vector<1x1x8xf32>
    %7 = arith.select %5, %6, %3 : vector<1x1x8xi1>, vector<1x1x8xf32>
    %cst_10 = arith.constant dense<0xFF800000> : vector<1x1xf32>
    %8 = vector.multi_reduction <maximumf>, %7, %cst_10 [2] : vector<1x1x8xf32> to vector<1x1xf32>
    %9 = vector.shape_cast %8 : vector<1x1xf32> to vector<1x1x1xf32>
    %10 = vector.broadcast %9 : vector<1x1x1xf32> to vector<1x1x8xf32>
    %11 = arith.subf %7, %10 : vector<1x1x8xf32>
    %12 = math.exp %11 : vector<1x1x8xf32>
    %cst_11 = arith.constant dense<0.000000e+00> : vector<1x1xf32>
    %13 = vector.multi_reduction <add>, %12, %cst_11 [2] : vector<1x1x8xf32> to vector<1x1xf32>
    %14 = vector.shape_cast %13 : vector<1x1xf32> to vector<1x1x1xf32>
    "tpu.trace_start"() <{level = 10 : i32, message = "bqs,bsh->bqh"}> : () -> ()
    %cst_12 = arith.constant dense<0.000000e+00> : vector<1x1x32xf32>
    %15 = tpu.matmul %12, %0, %cst_12 {dimension_numbers = #tpu.dot_dimension_numbers<[2], [1], [1], [2], [0, 0, 0, 1, 1, 2], [0], [0]>} : vector<1x1x8xf32>, vector<1x8x32xf32>, vector<1x1x32xf32> -> vector<1x1x32xf32>
    "tpu.trace_stop"() : () -> ()
    %16 = tpu.reciprocal %14 : vector<1x1x1xf32> -> vector<1x1x1xf32>
    %17 = vector.broadcast %16 : vector<1x1x1xf32> to vector<1x1x32xf32>
    %18 = arith.mulf %15, %17 : vector<1x1x32xf32>
    %c0_13 = arith.constant 0 : index
    %c0_14 = arith.constant 0 : index
    %c0_15 = arith.constant 0 : index
    %19 = vector.load %arg4[%c0_13, %c0_14, %c0_15] : memref<1x1x32xf32, #tpu.memory_space<vmem>>, vector<1x1x32xf32>
    tpu.vector_store %arg4[%c0_13, %c0_14, %c0_15], %18 {strides = array<i32>} : memref<1x1x32xf32, #tpu.memory_space<vmem>>, vector<1x1x32xf32>,
    return
  }
  func.func @transform_0(%arg0: i32) -> (i32, i32, i32) {
    %c0_i32 = arith.constant 0 : i32
    %c0_i32_0 = arith.constant 0 : i32
    %c0_i32_1 = arith.constant 0 : i32
    return %arg0, %c0_i32, %c0_i32_0 : i32, i32, i32
  }
  func.func @transform_1(%arg0: i32) -> (i32, i32, i32) {
    %c0_i32 = arith.constant 0 : i32
    %c0_i32_0 = arith.constant 0 : i32
    %c0_i32_1 = arith.constant 0 : i32
    return %arg0, %c0_i32, %c0_i32_0 : i32, i32, i32
  }
  func.func @transform_2(%arg0: i32) -> (i32, i32, i32) {
    %c0_i32 = arith.constant 0 : i32
    %c0_i32_0 = arith.constant 0 : i32
    %c0_i32_1 = arith.constant 0 : i32
    %c0_i32_2 = arith.constant 0 : i32
    return %c0_i32, %c0_i32_0, %c0_i32_1 : i32, i32, i32
  }
  func.func @transform_3(%arg0: i32) -> (i32, i32, i32) {
    %c0_i32 = arith.constant 0 : i32
    %c0_i32_0 = arith.constant 0 : i32
    %c0_i32_1 = arith.constant 0 : i32
    return %arg0, %c0_i32, %c0_i32_0 : i32, i32, i32
  }
}

</mosaic_0001>

<llo_original>
// kernel: tpu_custom_call.1
$region0: #{tpu_custom_call.1}
  #allocation0 [shape = 'u32[]', space=smem, size = 0x4, offset = 0x4, fixed_abs, tag = 'smem constant byte address 0x4 - core index']
  #allocation1 [shape = 'u32[144,128]{1,0:T(1,128)}', space=vmem, size = 0x12000, scoped, tag = 'internal scratch']
  %s0 = inlined_call_operand.hbm [shape: f32[2,8,32], index: 0, kind: input, shape index: {}]
  %s1 = inlined_call_operand.vmem [shape: f32[2,1,8], index: 1, kind: input, shape index: {}]
  %s2 = inlined_call_operand.vmem [shape: f32[1,1,32], index: 2, kind: input, shape index: {}]
  %s3 = inlined_call_operand.hbm [shape: f32[2,1,32], index: 3, kind: output, shape index: {}]
  %s4 = sld [smem:[#allocation0]]
  $region49: #{tpu_custom_call.1} parent=0
    _
  %s6 = ssub.s32 1, %s4
  %s7 = scalar_select 0, %s6, %s4
  $region1: #{tpu_custom_call.1} parent=0
    #allocation2 [shape = 'u8[8192]{0}', space=vmem, size = 0x2000, scoped, tag = 'input window, operand 0']
    #allocation3 [shape = 's32[2]{0}', space=sflag, size = 0x8, scoped, tag = 'scoped memory for tpu_custom_call.1']
    #allocation4 [shape = 's32[2]{0}', space=sflag, size = 0x8, scoped, tag = 'scoped memory for tpu_custom_call.1']
    #allocation5 [shape = 'u8[1024]{0}', space=vmem, size = 0x400, scoped, tag = 'output window, operand 0']
    %8 = vsyncpa [#allocation3], 0
    %s9 = scalar_lea.sflag [#allocation3], 1
    %10 = vsyncpa %s9, 0
    %11 = vsyncpa [#allocation4], 0
    %s12 = scalar_lea.sflag [#allocation4], 1
    %13 = vsyncpa %s12, 0
    loop: start=0, step=1, limit=4
    $region2: #{tpu_custom_call.1} parent=1 // loop_pre_header
      _
    $region3: #{tpu_custom_call.1} parent=1 // loop_header
      %s15 = sphi 0, %s19
      %p16 = scmp.ge.s32.totalorder %s15, 4
      %s25 = sphi 0, %s27
      %s28 = sphi 0, %s25
      %s29 = sphi 0, %s28
      %s45 = sphi 0, %s29
      %s51 = sphi 0, %s53
      %s54 = sphi 0, %s51
      %s55 = sphi 0, %s54
      %s71 = sphi 0, %s55
      %s75 = sphi 0, %s75
      %s77 = sphi 0, %s75
      %s78 = sphi 0, %s77
      %s92 = sphi 0, %s78
      %s98 = sphi 0, %s100
      %s101 = sphi 0, %s98
      %s102 = sphi 0, %s101
      %s118 = sphi 0, %s102
    $region4: #{tpu_custom_call.1} parent=1 // loop_header_branch
      %18 = sbr.rel (%p16) target = $region8
    $region5: #{tpu_custom_call.1} parent=1 // loop_body
      %s20 = ssub.s32 %s15, 1
      %s21 = ssub.s32 %s15, 2
      %s22 = sadd.s32 %s15, 1
      %s23 = ssub.s32 %s15, %s22
      %p24 = scmp.eq.s32.totalorder %s23, 0
      %s26 = sadd.s32 %s25, 1
      %s27 = scalar_select %p24, %s25, %s26
      %p30 = pneg %p24
      %p31 = scmp.eq.s32.totalorder %s15, 1
      %p32 = por %p30, %p31
      %p33 = scmp.ne.s32.totalorder %s25, %s28
      %p34 = scmp.eq.s32.totalorder %s15, 0
      %p35 = por %p33, %p34
      %p36 = scmp.ne.s32.totalorder %s25, %s28
      %p37 = scmp.eq.s32.totalorder %s20, 1
      %p38 = por %p36, %p37
      %p39 = scmp.ne.s32.totalorder %s28, %s29
      %p40 = scmp.eq.s32.totalorder %s20, 0
      %p41 = por %p39, %p40
      %p42 = scmp.ne.s32.totalorder %s28, %s29
      %p43 = scmp.eq.s32.totalorder %s21, 1
      %p44 = por %p42, %p43
      %p46 = scmp.ne.s32.totalorder %s29, %s45
      %p47 = scmp.eq.s32.totalorder %s21, 0
      %p48 = por %p46, %p47
      %s49 = ssub.s32 %s15, %s22
      %p50 = scmp.eq.s32.totalorder %s49, 0
      %s52 = sadd.s32 %s51, 1
      %s53 = scalar_select %p50, %s51, %s52
      %p56 = pneg %p50
      %p57 = scmp.eq.s32.totalorder %s15, 1
      %p58 = por %p56, %p57
      %p59 = scmp.ne.s32.totalorder %s51, %s54
      %p60 = scmp.eq.s32.totalorder %s15, 0
      %p61 = por %p59, %p60
      %p62 = scmp.ne.s32.totalorder %s51, %s54
      %p63 = scmp.eq.s32.totalorder %s20, 1
      %p64 = por %p62, %p63
      %p65 = scmp.ne.s32.totalorder %s54, %s55
      %p66 = scmp.eq.s32.totalorder %s20, 0
      %p67 = por %p65, %p66
      %p68 = scmp.ne.s32.totalorder %s54, %s55
      %p69 = scmp.eq.s32.totalorder %s21, 1
      %p70 = por %p68, %p69
      %p72 = scmp.ne.s32.totalorder %s55, %s71
      %p73 = scmp.eq.s32.totalorder %s21, 0
      %p74 = por %p72, %p73
      %s76 = sadd.s32 %s75, 1
      %p79 = scmp.eq.s32.totalorder %s15, 1
      %p80 = scmp.ne.s32.totalorder %s75, %s77
      %p81 = scmp.eq.s32.totalorder %s15, 0
      %p82 = por %p80, %p81
      %p83 = scmp.ne.s32.totalorder %s75, %s77
      %p84 = scmp.eq.s32.totalorder %s20, 1
      %p85 = por %p83, %p84
      %p86 = scmp.ne.s32.totalorder %s77, %s78
      %p87 = scmp.eq.s32.totalorder %s20, 0
      %p88 = por %p86, %p87
      %p89 = scmp.ne.s32.totalorder %s77, %s78
      %p90 = scmp.eq.s32.totalorder %s21, 1
      %p91 = por %p89, %p90
      %p93 = scmp.ne.s32.totalorder %s78, %s92
      %p94 = scmp.eq.s32.totalorder %s21, 0
      %p95 = por %p93, %p94
      %s96 = ssub.s32 %s15, %s22
      %p97 = scmp.eq.s32.totalorder %s96, 0
      %s99 = sadd.s32 %s98, 1
      %s100 = scalar_select %p97, %s98, %s99
      %p103 = pneg %p97
      %p104 = scmp.eq.s32.totalorder %s15, 1
      %p105 = por %p103, %p104
      %p106 = scmp.ne.s32.totalorder %s98, %s101
      %p107 = scmp.eq.s32.totalorder %s15, 0
      %p108 = por %p106, %p107
      %p109 = scmp.ne.s32.totalorder %s98, %s101
      %p110 = scmp.eq.s32.totalorder %s20, 1
      %p111 = por %p109, %p110
      %p112 = scmp.ne.s32.totalorder %s101, %s102
      %p113 = scmp.eq.s32.totalorder %s20, 0
      %p114 = por %p112, %p113
      %p115 = scmp.ne.s32.totalorder %s101, %s102
      %p116 = scmp.eq.s32.totalorder %s21, 1
      %p117 = por %p115, %p116
      %p119 = scmp.ne.s32.totalorder %s102, %s118
      %p120 = scmp.eq.s32.totalorder %s21, 0
      %p121 = por %p119, %p120
      %p122 = scmp.le.s32.totalorder 1, %s15
      %p123 = scmp.lt.s32.totalorder %s15, 3
      %p124 = pnand %p122, %p123
      %p125 = pneg %p124
      // Predicated region
      $region9: #{tpu_custom_call.1} parent=5 // pred_check
        _
      $region10: #{tpu_custom_call.1} parent=5 // pred_check_branch
        %127 = sbr.rel (%p124) target = $region12
      $region11: #{tpu_custom_call.1} parent=5 // pred_region
        %s128 = ssub.s32 %s15, 1
        // Predicated region
        $region13: #{tpu_custom_call.1} parent=11 // pred_check
          %p129 = pneg %p88
        $region14: #{tpu_custom_call.1} parent=11 // pred_check_branch
          %131 = sbr.rel (%p129) target = $region16
        $region15: #{tpu_custom_call.1} parent=11 // pred_region
          _
        $region16: #{tpu_custom_call.1} parent=11 // pred_fallthru
          _
      $region12: #{tpu_custom_call.1} parent=5 // pred_fallthru
        _
      %p132 = scmp.lt.s32.totalorder %s15, 2
      // Predicated region
      $region17: #{tpu_custom_call.1} parent=5 // pred_check
        %p133 = pneg %p132
      $region18: #{tpu_custom_call.1} parent=5 // pred_check_branch
        %135 = sbr.rel (%p133) target = $region20
      $region19: #{tpu_custom_call.1} parent=5 // pred_region
        // Predicated region
        $region21: #{tpu_custom_call.1} parent=19 // pred_check
          %p136 = pneg %p35
        $region22: #{tpu_custom_call.1} parent=19 // pred_check_branch
          %138 = sbr.rel (%p136) target = $region24
        $region23: #{tpu_custom_call.1} parent=19 // pred_region
          %s139 = sand.u32 %s25, 1
          %s140 = scalar_lea.sflag [#allocation3], %s139
          %s141 = sand.u32 %s25, 1
          %s142 = smul.addr %s141, 8
          %s143 = scalar_lea.vmem [#allocation2], %s142
          %s145 = ssub.s32 128, 128
          %146 = vsyncadd %s140, %s145
          %s147 = smul.addr %s15, 128
          %s148 = scalar_lea.hbm %s0, %s147
          %s150 = sshll.u32 %s143, 4
          %s151 = int_to_ptr.vmem [resolvable:$true] %s150
          %153 = dma.hbm_to_vmem [thread:$0]  %s148, 128, %s151, %s140
        $region24: #{tpu_custom_call.1} parent=19 // pred_fallthru
          _
        // Predicated region
        $region25: #{tpu_custom_call.1} parent=19 // pred_check
          %p154 = pneg %p61
        $region26: #{tpu_custom_call.1} parent=19 // pred_check_branch
          %156 = sbr.rel (%p154) target = $region28
        $region27: #{tpu_custom_call.1} parent=19 // pred_region
          %p157 = scmp.lt.s32.totalorder %s15, 1
          %s158 = scalar_select %p157, %s15, 1
          %s159 = scalar_lea.vmem %s1, %s158
        $region28: #{tpu_custom_call.1} parent=19 // pred_fallthru
          _
      $region20: #{tpu_custom_call.1} parent=5 // pred_fallthru
        _
      %p160 = scmp.le.s32.totalorder 1, %s15
      %p161 = scmp.lt.s32.totalorder %s15, 3
      %p162 = pnand %p160, %p161
      %p163 = pneg %p162
      // Predicated region
      $region29: #{tpu_custom_call.1} parent=5 // pred_check
        _
      $region30: #{tpu_custom_call.1} parent=5 // pred_check_branch
        %165 = sbr.rel (%p162) target = $region32
      $region31: #{tpu_custom_call.1} parent=5 // pred_region
        %s166 = ssub.s32 %s15, 1
        %s167 = sand.u32 %s28, 1
        %s168 = scalar_lea.sflag [#allocation3], %s167
        %s169 = sand.u32 %s28, 1
        %s170 = smul.addr %s169, 8
        %s171 = scalar_lea.vmem [#allocation2], %s170
        // Predicated region
        $region33: #{tpu_custom_call.1} parent=31 // pred_check
          %p172 = pneg %p41
        $region34: #{tpu_custom_call.1} parent=31 // pred_check_branch
          %174 = sbr.rel (%p172) target = $region36
        $region35: #{tpu_custom_call.1} parent=31 // pred_region
          %175 = dma.done %s168, 128
        $region36: #{tpu_custom_call.1} parent=31 // pred_fallthru
          _
        %s176 = sand.u32 %s28, 1
        %s177 = scalar_lea.sflag [#allocation3], %s176
        %s178 = sand.u32 %s28, 1
        %s179 = smul.addr %s178, 8
        %s180 = scalar_lea.vmem [#allocation2], %s179
        %p181 = pneg %p41
        %p182 = pneg %p38
        %p183 = scmp.lt.s32.totalorder %s20, 1
        %s184 = scalar_select %p183, %s20, 1
        %s185 = scalar_lea.vmem %s1, %s184
        %p186 = pneg %p67
        %p187 = pneg %p64
        %p188 = pneg %p88
        %p189 = pneg %p85
        %p190 = pneg %p114
        %p191 = pneg %p111
        %s192 = sand.u32 %s101, 1
        %s193 = scalar_lea.sflag [#allocation4], %s192
        %s194 = sand.u32 %s101, 1
        %s195 = scalar_lea.vmem [#allocation5], %s194
        %p196 = scmp.lt.s32.totalorder %s20, 1
        %s197 = scalar_select %p196, %s20, 1
        %s198 = scalar_lea.vmem %s1, %s197
        %v199 = vld [vmem:[%s171] sm:$0xff]
        %v200 = vld [vmem:[%s198] sm:$0x1]
        %v201 = vld [vmem:[%s2] sm:$0x1]
        %vm202 = vcmask 261120
        %v204 = vsel %vm202, %v201, 0
        %v207 = vsel %vm202, %v199, 0
        %209 = vmatprep.subr.mxu0 0.0
        %210 = vmatpush1.xpose.msra.mxu0 %v207
        %211 = vmatprep.subr.mxu0 0.0
        %212 = vmatpush1.xpose.msra.mxu0 0.0
        %213 = vmatprep.subr.mxu0 0.0
        %214 = vmatpush1.xpose.msra.mxu0 0.0
        %215 = vmatprep.subr.mxu0 0.0
        %216 = vmatpush1.xpose.msra.mxu0 0.0
        %217 = vmatprep.subr.mxu0 0.0
        %218 = vmatpush1.xpose.msra.mxu0 0.0
        %219 = vmatprep.subr.mxu0 0.0
        %220 = vmatpush1.xpose.msra.mxu0 0.0
        %221 = vmatprep.subr.mxu0 0.0
        %222 = vmatpush1.xpose.msra.mxu0 0.0
        %223 = vmatprep.subr.mxu0 0.0
        %224 = vmatpush1.xpose.msra.mxu0 0.0
        %225 = vmatprep.subr.mxu0 0.0
        %226 = vmatpush1.xpose.msra.mxu0 0.0
        %227 = vmatprep.subr.mxu0 0.0
        %228 = vmatpush1.xpose.msra.mxu0 0.0
        %229 = vmatprep.subr.mxu0 0.0
        %230 = vmatpush1.xpose.msra.mxu0 0.0
        %231 = vmatprep.subr.mxu0 0.0
        %232 = vmatpush1.xpose.msra.mxu0 0.0
        %233 = vmatprep.subr.mxu0 0.0
        %234 = vmatpush1.xpose.msra.mxu0 0.0
        %235 = vmatprep.subr.mxu0 0.0
        %236 = vmatpush1.xpose.msra.mxu0 0.0
        %237 = vmatprep.subr.mxu0 0.0
        %238 = vmatpush1.xpose.msra.mxu0 0.0
        %239 = vmatprep.subr.mxu0 0.0
        %240 = vmatpush1.xpose.msra.mxu0 0.0
        %241 = vmatprep.subr.mxu0 0.0
        %242 = vmatpush1.xpose.msra.mxu0 0.0
        %243 = vmatprep.subr.mxu0 0.0
        %244 = vmatpush1.xpose.msra.mxu0 0.0
        %245 = vmatprep.subr.mxu0 0.0
        %246 = vmatpush1.xpose.msra.mxu0 0.0
        %247 = vmatprep.subr.mxu0 0.0
        %248 = vmatpush1.xpose.msra.mxu0 0.0
        %249 = vmatprep.subr.mxu0 0.0
        %250 = vmatpush1.xpose.msra.mxu0 0.0
        %251 = vmatprep.subr.mxu0 0.0
        %252 = vmatpush1.xpose.msra.mxu0 0.0
        %253 = vmatprep.subr.mxu0 0.0
        %254 = vmatpush1.xpose.msra.mxu0 0.0
        %255 = vmatprep.subr.mxu0 0.0
        %256 = vmatpush1.xpose.msra.mxu0 0.0
        %257 = vmatprep.subr.mxu0 0.0
        %258 = vmatpush1.xpose.msra.mxu0 0.0
        %259 = vmatprep.subr.mxu0 0.0
        %260 = vmatpush1.xpose.msra.mxu0 0.0
        %261 = vmatprep.subr.mxu0 0.0
        %262 = vmatpush1.xpose.msra.mxu0 0.0
        %263 = vmatprep.subr.mxu0 0.0
        %264 = vmatpush1.xpose.msra.mxu0 0.0
        %265 = vmatprep.subr.mxu0 0.0
        %266 = vmatpush1.xpose.msra.mxu0 0.0
        %267 = vmatprep.subr.mxu0 0.0
        %268 = vmatpush1.xpose.msra.mxu0 0.0
        %269 = vmatprep.subr.mxu0 0.0
        %270 = vmatpush1.xpose.msra.mxu0 0.0
        %271 = vmatprep.subr.mxu0 0.0
        %272 = vmatpush1.xpose.msra.mxu0 0.0
        %273 = vmatprep.mubr.f32.mxu0 0.0
        %274 = vmatmul.mubr.f32.gmra.mrb[0].mxu0 %v204
        %v275 = vpop.f32.mrb[0].mxu0
        %v276 = vadd.f32 0.0, %v275
        %v277 = vpop.f32.mrb[0].mxu0
        %278 = vdwg.mxu0
        %vm279 = vcmp.gt.f32.partialorder %v200, 0.0
        %v280 = vsel %vm279, -inf, %v276
        %vm281 = vcmask 57344
        %v282 = vsel %vm281, %v280, -inf
        %283 = vmax.xlane.f32.xlu0 %v282
        %v284 = vpop.xlane.xlu0 %283
        %v285 = vsub.f32 %v280, %v284
        %v286 = vmul.f32 %v285, 1.442695
        %v287 = vpow.pop %v286
        %v288 = vsel %vm281, %v287, 0.0
        %289 = vadd.xlane.f32.xlu0 %v288
        %v290 = vpop.xlane.xlu0 %289
        %vm291 = vcmask 64512
        %v293 = vsel %vm291, %v287, 0
        %295 = vmatprep.subr.mxu0 0.0
        %296 = vmatpush1.msra.mxu0 %v199
        %297 = vmatprep.subr.mxu0 0.0
        %298 = vmatpush1.msra.mxu0 0.0
        %299 = vmatprep.subr.mxu0 0.0
        %300 = vmatpush1.msra.mxu0 0.0
        %301 = vmatprep.subr.mxu0 0.0
        %302 = vmatpush1.msra.mxu0 0.0
        %303 = vmatprep.subr.mxu0 0.0
        %304 = vmatpush1.msra.mxu0 0.0
        %305 = vmatprep.subr.mxu0 0.0
        %306 = vmatpush1.msra.mxu0 0.0
        %307 = vmatprep.subr.mxu0 0.0
        %308 = vmatpush1.msra.mxu0 0.0
        %309 = vmatprep.subr.mxu0 0.0
        %310 = vmatpush1.msra.mxu0 0.0
        %311 = vmatprep.subr.mxu0 0.0
        %312 = vmatpush1.msra.mxu0 0.0
        %313 = vmatprep.subr.mxu0 0.0
        %314 = vmatpush1.msra.mxu0 0.0
        %315 = vmatprep.subr.mxu0 0.0
        %316 = vmatpush1.msra.mxu0 0.0
        %317 = vmatprep.subr.mxu0 0.0
        %318 = vmatpush1.msra.mxu0 0.0
        %319 = vmatprep.subr.mxu0 0.0
        %320 = vmatpush1.msra.mxu0 0.0
        %321 = vmatprep.subr.mxu0 0.0
        %322 = vmatpush1.msra.mxu0 0.0
        %323 = vmatprep.subr.mxu0 0.0
        %324 = vmatpush1.msra.mxu0 0.0
        %325 = vmatprep.subr.mxu0 0.0
        %326 = vmatpush1.msra.mxu0 0.0
        %327 = vmatprep.subr.mxu0 0.0
        %328 = vmatpush1.msra.mxu0 0.0
        %329 = vmatprep.subr.mxu0 0.0
        %330 = vmatpush1.msra.mxu0 0.0
        %331 = vmatprep.subr.mxu0 0.0
        %332 = vmatpush1.msra.mxu0 0.0
        %333 = vmatprep.subr.mxu0 0.0
        %334 = vmatpush1.msra.mxu0 0.0
        %335 = vmatprep.subr.mxu0 0.0
        %336 = vmatpush1.msra.mxu0 0.0
        %337 = vmatprep.subr.mxu0 0.0
        %338 = vmatpush1.msra.mxu0 0.0
        %339 = vmatprep.subr.mxu0 0.0
        %340 = vmatpush1.msra.mxu0 0.0
        %341 = vmatprep.subr.mxu0 0.0
        %342 = vmatpush1.msra.mxu0 0.0
        %343 = vmatprep.subr.mxu0 0.0
        %344 = vmatpush1.msra.mxu0 0.0
        %345 = vmatprep.subr.mxu0 0.0
        %346 = vmatpush1.msra.mxu0 0.0
        %347 = vmatprep.subr.mxu0 0.0
        %348 = vmatpush1.msra.mxu0 0.0
        %349 = vmatprep.subr.mxu0 0.0
        %350 = vmatpush1.msra.mxu0 0.0
        %351 = vmatprep.subr.mxu0 0.0
        %352 = vmatpush1.msra.mxu0 0.0
        %353 = vmatprep.subr.mxu0 0.0
        %354 = vmatpush1.msra.mxu0 0.0
        %355 = vmatprep.subr.mxu0 0.0
        %356 = vmatpush1.msra.mxu0 0.0
        %357 = vmatprep.subr.mxu0 0.0
        %358 = vmatpush1.msra.mxu0 0.0
        %359 = vmatprep.mubr.f32.mxu0 0.0
        %360 = vmatmul.mubr.f32.gmra.mrb[0].mxu0 %v293
        %v361 = vpop.f32.mrb[0].mxu0
        %v362 = vadd.f32 0.0, %v361
        %v363 = vpop.f32.mrb[0].mxu0
        %364 = vdwg.mxu0
        %v365 = vrcp.pop %v290
        %v366 = vmul.f32 %v362, %v365
        %vm367 = vcmask 253952
        %368 = vst.msk [vmem:[%s195] sm:$0x1] %vm367, %v366
        %s369 = sand.u32 %s101, 1
        %s370 = scalar_lea.sflag [#allocation4], %s369
        %s371 = sand.u32 %s101, 1
        %s372 = scalar_lea.vmem [#allocation5], %s371
        // Predicated region
        $region37: #{tpu_custom_call.1} parent=31 // pred_check
          %p373 = pneg %p111
        $region38: #{tpu_custom_call.1} parent=31 // pred_check_branch
          %375 = sbr.rel (%p373) target = $region40
        $region39: #{tpu_custom_call.1} parent=31 // pred_region
          %s377 = ssub.s32 16, 16
          %378 = vsyncadd %s370, %s377
          %s379 = smul.addr %s20, 16
          %s380 = scalar_lea.hbm %s3, %s379
          %s382 = sshll.u32 %s372, 4
          %s383 = int_to_ptr.vmem [resolvable:$true] %s382
          %385 = dma.vmem_to_hbm [thread:$0]  %s383, 16, %s380, %s370
        $region40: #{tpu_custom_call.1} parent=31 // pred_fallthru
          _
      $region32: #{tpu_custom_call.1} parent=5 // pred_fallthru
        _
      %p386 = scmp.le.s32.totalorder 2, %s15
      // Predicated region
      $region41: #{tpu_custom_call.1} parent=5 // pred_check
        %p387 = pneg %p386
      $region42: #{tpu_custom_call.1} parent=5 // pred_check_branch
        %389 = sbr.rel (%p387) target = $region44
      $region43: #{tpu_custom_call.1} parent=5 // pred_region
        %s390 = ssub.s32 %s15, 2
        // Predicated region
        $region45: #{tpu_custom_call.1} parent=43 // pred_check
          %p391 = pneg %p117
        $region46: #{tpu_custom_call.1} parent=43 // pred_check_branch
          %393 = sbr.rel (%p391) target = $region48
        $region47: #{tpu_custom_call.1} parent=43 // pred_region
          %s394 = sand.u32 %s102, 1
          %s395 = scalar_lea.sflag [#allocation4], %s394
          %s396 = sand.u32 %s102, 1
          %s397 = scalar_lea.vmem [#allocation5], %s396
          %398 = dma.done %s395, 16
        $region48: #{tpu_custom_call.1} parent=43 // pred_fallthru
          _
      $region44: #{tpu_custom_call.1} parent=5 // pred_fallthru
        _
    $region6: #{tpu_custom_call.1} parent=1 // loop_footer
      %s19 = sadd.s32 1, %s15
    $region7: #{tpu_custom_call.1} parent=1 // loop_footer_branch
      %14 = sbr.rel target = $region3
    $region8: #{tpu_custom_call.1} parent=1 // loop_exit
      _
    %399 = vsyncpa [#allocation3], 1
    %s400 = scalar_lea.sflag [#allocation3], 1
    %401 = vsyncpa %s400, 1
    %402 = vsyncpa [#allocation4], 1
    %s403 = scalar_lea.sflag [#allocation4], 1
    %404 = vsyncpa %s403, 1

</llo_original>
